<compile_context>
chip_gen: v7x
topology: tpu7x:2x2x1
jax: 0.10.0
libtpu: 0.0.40
codegen_flags: <defaults>
</compile_context>

<pallas_src>
import functools
import math

import jax
import jax.numpy as jnp
import numpy as np
from jax.experimental import pallas as pl
from jax.experimental.pallas import tpu as pltpu

_LN2 = math.log(2.0)            # softplus(0)
_TWO_OVER_LN2 = 2.0 / _LN2


def _svf_decoder_kernel(lat_ref, w1t_ref, w2c_ref, b2f_ref, out_ref,
                        *, TB, L, D, C, S):
    """One grid step processes TB batch items.

    lat_ref : (TB, L, D)     latent block, native layout
    w1t_ref : (L, 5*C)       fused stage-1 weight (non-parallel scale folded in)
    w2c_ref : (5*S, D)       concatenated stage-2 weights, rows (i, s)
    b2f_ref : (5*S, TB*5*C)  effective bias (b1 folded into b2), lane-tiled
    out_ref : (5*S, TB*5*C)  lane-dense output slab:
                             out[i*S+s, tb*5C + j*C + c]  (wrapper keeps j == i)
    """
    # ---- stage 1: in-kernel latent transpose + one fused matmul (M = TB*D) ---
    lat = lat_ref[...]                                          # (TB, L, D)
    latT = jnp.swapaxes(lat, 1, 2).reshape(TB * D, L)           # rows = (tb, d)
    h = jnp.dot(latT, w1t_ref[...],
                preferred_element_type=jnp.float32)             # (TB*D, 5C)

    # ---- relayout so D is the contraction axis of one fused stage-2 matmul ---
    # (leading-axes swap; minor dim preserved -> cheap sublane shuffle on XLU)
    H = jnp.swapaxes(h.reshape(TB, D, 5 * C), 0, 1).reshape(D, TB * 5 * C)

    # ---- stage 2: single matmul covering all TB items and all 5 decoders -----
    g = jnp.dot(w2c_ref[...], H,
                preferred_element_type=jnp.float32)             # (5S, TB*5C)
    g = g + b2f_ref[...]

    # ---- activations on Gs / twoRs row blocks; direct static slice stores ----
    # Gs = tan(0.5 * sigmoid(.) * pi); sigmoid < 1 keeps the argument < pi/2.
    g0 = g[0:S, :]
    sig = pl.reciprocal(1.0 + jnp.exp(-g0), approx=False)
    arg = (0.5 * jnp.pi) * sig
    out_ref[0:S, :] = jnp.sin(arg) * pl.reciprocal(jnp.cos(arg), approx=False)

    # twoRs = 2 * softplus(.) / softplus(0) + 0.01
    g1 = g[S:2 * S, :]
    sp = jnp.maximum(g1, 0.0) + jnp.log(1.0 + jnp.exp(-jnp.abs(g1)))
    out_ref[S:2 * S, :] = _TWO_OVER_LN2 * sp + 0.01

    # c_hps / c_bps / c_lps are linear.
    out_ref[2 * S:, :] = g[2 * S:, :]


def _tile_bytes(rows, cols, dtype_bytes=4):
    """Lane-padded ((8,128)) VMEM footprint of a (rows, cols) f32 tile."""
    return (-(-rows // 8) * 8) * (-(-cols // 128) * 128) * dtype_bytes


def _pick_batch_block(B, L, D, C, S, *, vmem_budget_bytes=12 << 20, cap_max=512):
    """Largest TB that divides B, fits the per-step VMEM budget, and keeps
    >= 2 grid steps (both v7x TensorCores busy), preferring an even step count."""
    per_tb = (2 * _tile_bytes(L, D)              # latent block (x2 pipeline bufs)
              + 2 * _tile_bytes(5 * S, 5 * C)    # output block (x2)
              + 2 * _tile_bytes(5 * S, 5 * C)    # tiled bias   (x2)
              + 2 * _tile_bytes(D, 5 * C)        # h + H intermediates
              + 1 * _tile_bytes(D, L))           # transposed latent intermediate
    cap = max(1, int(vmem_budget_bytes // max(per_tb, 1)))
    cap = min(cap, cap_max)
    if B > 1:
        cap = min(cap, B // 2)        # keep >= 2 grid steps
    cap = max(cap, 1)

    best_any = 1
    for tb in range(cap, 0, -1):
        if B % tb == 0:
            best_any = tb
            break
    best_even = None
    for tb in range(best_any, 0, -1):
        if B % tb == 0 and (B // tb) % 2 == 0:
            best_even = tb
            break
    if best_even is not None and best_even * 2 >= best_any:
        return best_even
    return best_any


def svf_decoder_pallas(latent, w1, b1, w2, b2, *, parallel=True, svf_per_channel=16):
    """latent: (B, L, D); stacked module-format params:
       w1 (5, C, L), b1 (5, 1, C), w2 (5, S, D), b2 (5, 1, S).
       Decoder order: [Gs, twoRs, c_hps, c_bps, c_lps]."""
    B, L, D = latent.shape
    C = w1.shape[1]
    S = w2.shape[1]
    assert D % 8 == 0, "latent feature dim must be a multiple of 8 (sublane tiling)"

    TB = _pick_batch_block(B, L, D, C, S)
    nsteps = B // TB

    # ---- host-side parameter prep (once, outside the hot loop) ---------------
    # Fold the non-parallel 1/sqrt(S) latent scale into w1 (exact; the Gs decoder
    # always sees the unscaled latent; b1 is intentionally not scaled).
    scale = 1.0 if parallel else 1.0 / math.sqrt(svf_per_channel)
    scales = jnp.asarray([1.0, scale, scale, scale, scale],
                         jnp.float32).reshape(5, 1, 1)
    w1t_all = jnp.transpose(w1 * scales, (2, 0, 1)).reshape(L, 5 * C)   # [l, i*C+c]
    w2_cat = w2.reshape(5 * S, D)                                       # [i*S+s, d]

    # Fold b1 into an effective stage-2 bias (exact):
    #   b2_eff[i, s, c] = b2[i, s] + b1[i, c] * sum_d w2[i, s, d]
    w2_rowsum = jnp.sum(w2, axis=-1)                                    # (5, S)
    b2_eff = b2[:, 0, :, None] + b1[:, 0, None, :] * w2_rowsum[:, :, None]  # (5,S,C)
    # Tile to the kernel's lane layout: b2full[i*S+s, tb*5C + j*C + c] = b2_eff[i,s,c]
    b2full = jnp.tile(b2_eff.reshape(5 * S, C), (1, 5 * TB))            # (5S, TB*5C)

    const2 = lambda shape: pl.BlockSpec(shape, lambda b: (0, 0))

    grid_spec = pltpu.PrefetchScalarGridSpec(
        num_scalar_prefetch=0,
        grid=(nsteps,),
        in_specs=[
            pl.BlockSpec((TB, L, D), lambda b: (b, 0, 0)),   # latent, native layout
            const2((L, 5 * C)),                              # fused W1^T (scale folded)
            const2((5 * S, D)),                              # concatenated W2
            const2((5 * S, TB * 5 * C)),                     # effective bias, tiled
        ],
        out_specs=pl.BlockSpec((5 * S, TB * 5 * C), lambda b: (b, 0)),
    )

    kernel = functools.partial(_svf_decoder_kernel, TB=TB, L=L, D=D, C=C, S=S)
    out2d = pl.pallas_call(
        kernel,
        out_shape=jax.ShapeDtypeStruct((nsteps * 5 * S, TB * 5 * C), jnp.float32),
        grid_spec=grid_spec,
        compiler_params=pltpu.CompilerParams(
            dimension_semantics=("parallel",),
            vmem_limit_bytes=32 * 1024 * 1024),   # raises v5e's 16 MiB default
    )(latent, w1t_all, w2_cat, b2full)

    # ---- wrapper-side layout plumbing: slice diagonal blocks -> (B, C, S) -----
    out6 = out2d.reshape(nsteps, 5, S, TB, 5, C)

    def grab(i):
        y = out6[:, i, :, :, i, :]               # (nsteps, S, TB, C)
        y = jnp.transpose(y, (0, 2, 3, 1))       # (nsteps, TB, C, S)
        return y.reshape(nsteps * TB, C, S)[:B]

    return dict(Gs=grab(0), twoRs=grab(1), c_hps=grab(2),
                c_bps=grab(3), c_lps=grab(4))


def init_params(key, in_shape, out_shape, *, sr=48000, f_init=(40, 12000), parallel=True):
    """Deterministic synthetic init of the 5 LinearLinear decoders, stacked on axis 0.

    Order: [Gs, twoRs, c_hps, c_bps, c_lps]."""
    L, D = in_shape
    C, S = out_shape
    keys = jax.random.split(key, 20)
    w1s, b1s, w2s, b2s = [], [], [], []
    for i in range(5):
        k1, k2, k3, k4 = keys[4 * i:4 * i + 4]
        w1s.append(jax.random.normal(k1, (C, L), jnp.float32) / math.sqrt(L))
        b1s.append(0.01 * jax.random.normal(k2, (1, C), jnp.float32))
        w2s.append(jax.random.normal(k3, (S, D), jnp.float32) / math.sqrt(D))
        b2s.append(0.01 * jax.random.normal(k4, (1, S), jnp.float32))

    # Gs_decoder.dense_2.bias override (advanced=False, so no permutation)
    f0, f1 = f_init
    gs_bias = f0 * (f1 / f0) ** jnp.linspace(0.0, 1.0, S)
    gs_bias = jnp.log(2.0 * gs_bias / (sr - 2.0 * gs_bias)).astype(jnp.float32)
    b2s[0] = gs_bias.reshape(1, S)

    if not parallel:
        ones = jnp.ones((1, S), jnp.float32)
        b2s[2] = ones          # c_hps
        b2s[3] = 2.0 * ones    # c_bps
        b2s[4] = ones          # c_lps

    return (jnp.stack(w1s), jnp.stack(b1s), jnp.stack(w2s), jnp.stack(b2s))


def _reference(latent, w1, b1, w2, b2, *, parallel=True, svf_per_channel=16):
    """Pure-JAX reference matching the PyTorch forward."""
    def lin(i, x):
        h = jnp.einsum('cl,bld->bcd', w1[i], x) + b1[i, 0][None, :, None]
        return jnp.einsum('bcd,sd->bcs', h, w2[i]) + b2[i, 0][None, None, :]

    gs = lin(0, latent)
    lat2 = latent if parallel else latent / math.sqrt(svf_per_channel)
    rs, hp, bp, lp = lin(1, lat2), lin(2, lat2), lin(3, lat2), lin(4, lat2)
    gs = jnp.tan(0.5 * jax.nn.sigmoid(gs) * jnp.pi)
    rs = 2.0 * jax.nn.softplus(rs) / _LN2 + 0.01
    return dict(Gs=gs, twoRs=rs, c_hps=hp, c_bps=bp, c_lps=lp)


if __name__ == "__main__":
    # small shapes consistent with the module (input_shape=(L, D), output=(C, S))
    B, L, D = 2, 16, 32
    C, S = 8, 16          # num_channel=8, svf_per_channel=16

    key = jax.random.PRNGKey(0)
    k_lat, k_par = jax.random.split(key)
    latent = jax.random.normal(k_lat, (B, L, D), jnp.float32)

    for parallel in (True, False):
        w1, b1, w2, b2 = init_params(k_par, (L, D), (C, S), parallel=parallel)
        out = svf_decoder_pallas(latent, w1, b1, w2, b2,
                                 parallel=parallel, svf_per_channel=S)
        out = jax.block_until_ready(out)
        ref = _reference(latent, w1, b1, w2, b2,
                         parallel=parallel, svf_per_channel=S)
        for name in ("Gs", "twoRs", "c_hps", "c_bps", "c_lps"):
            np.testing.assert_allclose(np.asarray(out[name]), np.asarray(ref[name]),
                                       rtol=1e-4, atol=1e-4)

    print("KERNEL_OK")
</pallas_src>

<mosaic_0001>
module attributes {stable_mosaic.version = 11 : i64} {
  func.func @_svf_decoder_kernel(%arg0: i32, %arg1: memref<1x16x32xf32, #tpu.memory_space<vmem>>, %arg2: memref<16x40xf32, #tpu.memory_space<vmem>>, %arg3: memref<80x32xf32, #tpu.memory_space<vmem>>, %arg4: memref<80x40xf32, #tpu.memory_space<vmem>>, %arg5: memref<80x40xf32, #tpu.memory_space<vmem>>) attributes {dimension_semantics = [#tpu.dimension_semantics<parallel>], iteration_bounds = array<i64: 2>, scalar_prefetch = 0 : i64, scratch_operands = 0 : i64, tpu.core_type = #tpu.core_type<tc>, window_params = [{transform_indices = @transform_0, window_bounds = array<i64: 1, 16, 32>}, {pipeline_mode = #tpu.pipeline_mode<synchronous>, transform_indices = @transform_1, window_bounds = array<i64: 16, 40>}, {pipeline_mode = #tpu.pipeline_mode<synchronous>, transform_indices = @transform_2, window_bounds = array<i64: 80, 32>}, {pipeline_mode = #tpu.pipeline_mode<synchronous>, transform_indices = @transform_3, window_bounds = array<i64: 80, 40>}, {transform_indices = @transform_4, window_bounds = array<i64: 80, 40>}]} {
    %c0 = arith.constant 0 : index
    %c0_0 = arith.constant 0 : index
    %c0_1 = arith.constant 0 : index
    %0 = vector.load %arg1[%c0, %c0_0, %c0_1] : memref<1x16x32xf32, #tpu.memory_space<vmem>>, vector<1x16x32xf32>
    %1 = tpu.transpose %0, [0, 2, 1] : vector<1x16x32xf32> -> vector<1x32x16xf32>
    %2 = vector.shape_cast %1 : vector<1x32x16xf32> to vector<32x16xf32>
    %c0_2 = arith.constant 0 : index
    %c0_3 = arith.constant 0 : index
    %3 = vector.load %arg2[%c0_2, %c0_3] : memref<16x40xf32, #tpu.memory_space<vmem>>, vector<16x40xf32>
    %cst = arith.constant dense<0.000000e+00> : vector<32x40xf32>
    %4 = tpu.matmul %2, %3, %cst {dimension_numbers = #tpu.dot_dimension_numbers<[1], [0], [0], [1], [0, 0, 1, 1], [], []>} : vector<32x16xf32>, vector<16x40xf32>, vector<32x40xf32> -> vector<32x40xf32>
    %5 = vector.shape_cast %4 : vector<32x40xf32> to vector<1x32x40xf32>
    %6 = tpu.transpose %5, [1, 0, 2] : vector<1x32x40xf32> -> vector<32x1x40xf32>
    %7 = vector.shape_cast %6 : vector<32x1x40xf32> to vector<32x40xf32>
    %c0_4 = arith.constant 0 : index
    %c0_5 = arith.constant 0 : index
    %8 = vector.load %arg3[%c0_4, %c0_5] : memref<80x32xf32, #tpu.memory_space<vmem>>, vector<80x32xf32>
    %cst_6 = arith.constant dense<0.000000e+00> : vector<80x40xf32>
    %9 = tpu.matmul %8, %7, %cst_6 {dimension_numbers = #tpu.dot_dimension_numbers<[1], [0], [0], [1], [0, 0, 1, 1], [], []>} : vector<80x32xf32>, vector<32x40xf32>, vector<80x40xf32> -> vector<80x40xf32>
    %c0_7 = arith.constant 0 : index
    %c0_8 = arith.constant 0 : index
    %10 = vector.load %arg4[%c0_7, %c0_8] : memref<80x40xf32, #tpu.memory_space<vmem>>, vector<80x40xf32>
    %11 = arith.addf %9, %10 : vector<80x40xf32>
    %12 = vector.extract_strided_slice %11 {offsets = [0, 0], sizes = [16, 40], strides = [1, 1]} : vector<80x40xf32> to vector<16x40xf32>
    %cst_9 = arith.constant 0.000000e+00 : f32
    %13 = vector.broadcast %cst_9 : f32 to vector<16x40xf32>
    %14 = arith.subf %13, %12 : vector<16x40xf32>
    %15 = math.exp %14 : vector<16x40xf32>
    %cst_10 = arith.constant 1.000000e+00 : f32
    %16 = vector.broadcast %cst_10 : f32 to vector<16x40xf32>
    %17 = arith.addf %16, %15 : vector<16x40xf32>
    %18 = tpu.reciprocal %17 : vector<16x40xf32> -> vector<16x40xf32>
    %cst_11 = arith.constant 1.57079637 : f32
    %19 = vector.broadcast %cst_11 : f32 to vector<16x40xf32>
    %20 = arith.mulf %19, %18 : vector<16x40xf32>
    %21 = math.sin %20 : vector<16x40xf32>
    %22 = math.cos %20 : vector<16x40xf32>
    %23 = tpu.reciprocal %22 : vector<16x40xf32> -> vector<16x40xf32>
    %24 = arith.mulf %21, %23 : vector<16x40xf32>
    %c0_12 = arith.constant 0 : index
    %c0_13 = arith.constant 0 : index
    %25 = vector.load %arg5[%c0_12, %c0_13] : memref<80x40xf32, #tpu.memory_space<vmem>>, vector<16x40xf32>
    tpu.vector_store %arg5[%c0_12, %c0_13], %24 {strides = array<i32>} : memref<80x40xf32, #tpu.memory_space<vmem>>, vector<16x40xf32>,
    %26 = vector.extract_strided_slice %11 {offsets = [16, 0], sizes = [16, 40], strides = [1, 1]} : vector<80x40xf32> to vector<16x40xf32>
    %cst_14 = arith.constant 0.000000e+00 : f32
    %27 = vector.broadcast %cst_14 : f32 to vector<16x40xf32>
    %28 = arith.maximumf %26, %27 : vector<16x40xf32>
    %29 = math.absf %26 : vector<16x40xf32>
    %cst_15 = arith.constant 0.000000e+00 : f32
    %30 = vector.broadcast %cst_15 : f32 to vector<16x40xf32>
    %31 = arith.subf %30, %29 : vector<16x40xf32>
    %32 = math.exp %31 : vector<16x40xf32>
    %cst_16 = arith.constant 1.000000e+00 : f32
    %33 = vector.broadcast %cst_16 : f32 to vector<16x40xf32>
    %34 = arith.addf %33, %32 : vector<16x40xf32>
    %35 = math.log %34 : vector<16x40xf32>
    %36 = arith.addf %28, %35 : vector<16x40xf32>
    %cst_17 = arith.constant 2.885390e+00 : f32
    %37 = vector.broadcast %cst_17 : f32 to vector<16x40xf32>
    %38 = arith.mulf %37, %36 : vector<16x40xf32>
    %cst_18 = arith.constant 0.00999999977 : f32
    %39 = vector.broadcast %cst_18 : f32 to vector<16x40xf32>
    %40 = arith.addf %38, %39 : vector<16x40xf32>
    %c16 = arith.constant 16 : index
    %c0_19 = arith.constant 0 : index
    %41 = vector.load %arg5[%c16, %c0_19] : memref<80x40xf32, #tpu.memory_space<vmem>>, vector<16x40xf32>
    tpu.vector_store %arg5[%c16, %c0_19], %40 {strides = array<i32>} : memref<80x40xf32, #tpu.memory_space<vmem>>, vector<16x40xf32>,
    %42 = vector.extract_strided_slice %11 {offsets = [32, 0], sizes = [48, 40], strides = [1, 1]} : vector<80x40xf32> to vector<48x40xf32>
    %c32 = arith.constant 32 : index
    %c0_20 = arith.constant 0 : index
    %43 = vector.load %arg5[%c32, %c0_20] : memref<80x40xf32, #tpu.memory_space<vmem>>, vector<48x40xf32>
    tpu.vector_store %arg5[%c32, %c0_20], %42 {strides = array<i32>} : memref<80x40xf32, #tpu.memory_space<vmem>>, vector<48x40xf32>,
    return
  }
  func.func @transform_0(%arg0: i32) -> (i32, i32, i32) {
    %c0_i32 = arith.constant 0 : i32
    %c0_i32_0 = arith.constant 0 : i32
    %c0_i32_1 = arith.constant 0 : i32
    return %arg0, %c0_i32, %c0_i32_0 : i32, i32, i32
  }
  func.func @transform_1(%arg0: i32) -> (i32, i32) {
    %c0_i32 = arith.constant 0 : i32
    %c0_i32_0 = arith.constant 0 : i32
    %c0_i32_1 = arith.constant 0 : i32
    return %c0_i32, %c0_i32_0 : i32, i32
  }
  func.func @transform_2(%arg0: i32) -> (i32, i32) {
    %c0_i32 = arith.constant 0 : i32
    %c0_i32_0 = arith.constant 0 : i32
    %c0_i32_1 = arith.constant 0 : i32
    return %c0_i32, %c0_i32_0 : i32, i32
  }
  func.func @transform_3(%arg0: i32) -> (i32, i32) {
    %c0_i32 = arith.constant 0 : i32
    %c0_i32_0 = arith.constant 0 : i32
    %c0_i32_1 = arith.constant 0 : i32
    return %c0_i32, %c0_i32_0 : i32, i32
  }
  func.func @transform_4(%arg0: i32) -> (i32, i32) {
    %c0_i32 = arith.constant 0 : i32
    %c0_i32_0 = arith.constant 0 : i32
    return %arg0, %c0_i32 : i32, i32
  }
}

</mosaic_0001>

<llo_original>
// kernel: tpu_custom_call.1
$region0: #{tpu_custom_call.1}
  #allocation0 [shape = 'u32[]', space=smem, size = 0x4, offset = 0x4, fixed_abs, tag = 'smem constant byte address 0x4 - core index']
  #allocation1 [shape = 'u32[144,128]{1,0:T(1,128)}', space=vmem, size = 0x12000, scoped, tag = 'internal scratch']
  %s0 = inlined_call_operand.vmem [shape: f32[2,16,32], index: 0, kind: input, shape index: {}]
  %s1 = inlined_call_operand.vmem [shape: f32[16,40], index: 1, kind: input, shape index: {}]
  %s2 = inlined_call_operand.vmem [shape: f32[80,32], index: 2, kind: input, shape index: {}]
  %s3 = inlined_call_operand.vmem [shape: f32[80,40], index: 3, kind: input, shape index: {}]
  %s4 = inlined_call_operand.vmem [shape: f32[160,40], index: 4, kind: output, shape index: {}]
  %s5 = sld [smem:[#allocation0]]
  $region49: #{tpu_custom_call.1} parent=0
    _
  %s7 = ssub.s32 1, %s5
  %s8 = scalar_select 0, %s7, %s5
  loop: start=0, step=1, limit=4
  $region2: #{tpu_custom_call.1} parent=0 // loop_pre_header
    _
  $region3: #{tpu_custom_call.1} parent=0 // loop_header
    %s10 = sphi 0, %s14
    %p11 = scmp.ge.s32.totalorder %s10, 4
    %s20 = sphi 0, %s22
    %s23 = sphi 0, %s20
    %s24 = sphi 0, %s23
    %s40 = sphi 0, %s24
    %s44 = sphi 0, %s44
    %s46 = sphi 0, %s44
    %s47 = sphi 0, %s46
    %s61 = sphi 0, %s47
    %s65 = sphi 0, %s65
    %s67 = sphi 0, %s65
    %s68 = sphi 0, %s67
    %s82 = sphi 0, %s68
    %s86 = sphi 0, %s86
    %s88 = sphi 0, %s86
    %s89 = sphi 0, %s88
    %s103 = sphi 0, %s89
    %s109 = sphi 0, %s111
    %s112 = sphi 0, %s109
    %s113 = sphi 0, %s112
    %s129 = sphi 0, %s113
  $region4: #{tpu_custom_call.1} parent=0 // loop_header_branch
    %13 = sbr.rel (%p11) target = $region8
  $region5: #{tpu_custom_call.1} parent=0 // loop_body
    %s15 = ssub.s32 %s10, 1
    %s16 = ssub.s32 %s10, 2
    %s17 = sadd.s32 %s10, 1
    %s18 = ssub.s32 %s10, %s17
    %p19 = scmp.eq.s32.totalorder %s18, 0
    %s21 = sadd.s32 %s20, 1
    %s22 = scalar_select %p19, %s20, %s21
    %p25 = pneg %p19
    %p26 = scmp.eq.s32.totalorder %s10, 1
    %p27 = por %p25, %p26
    %p28 = scmp.ne.s32.totalorder %s20, %s23
    %p29 = scmp.eq.s32.totalorder %s10, 0
    %p30 = por %p28, %p29
    %p31 = scmp.ne.s32.totalorder %s20, %s23
    %p32 = scmp.eq.s32.totalorder %s15, 1
    %p33 = por %p31, %p32
    %p34 = scmp.ne.s32.totalorder %s23, %s24
    %p35 = scmp.eq.s32.totalorder %s15, 0
    %p36 = por %p34, %p35
    %p37 = scmp.ne.s32.totalorder %s23, %s24
    %p38 = scmp.eq.s32.totalorder %s16, 1
    %p39 = por %p37, %p38
    %p41 = scmp.ne.s32.totalorder %s24, %s40
    %p42 = scmp.eq.s32.totalorder %s16, 0
    %p43 = por %p41, %p42
    %s45 = sadd.s32 %s44, 1
    %p48 = scmp.eq.s32.totalorder %s10, 1
    %p49 = scmp.ne.s32.totalorder %s44, %s46
    %p50 = scmp.eq.s32.totalorder %s10, 0
    %p51 = por %p49, %p50
    %p52 = scmp.ne.s32.totalorder %s44, %s46
    %p53 = scmp.eq.s32.totalorder %s15, 1
    %p54 = por %p52, %p53
    %p55 = scmp.ne.s32.totalorder %s46, %s47
    %p56 = scmp.eq.s32.totalorder %s15, 0
    %p57 = por %p55, %p56
    %p58 = scmp.ne.s32.totalorder %s46, %s47
    %p59 = scmp.eq.s32.totalorder %s16, 1
    %p60 = por %p58, %p59
    %p62 = scmp.ne.s32.totalorder %s47, %s61
    %p63 = scmp.eq.s32.totalorder %s16, 0
    %p64 = por %p62, %p63
    %s66 = sadd.s32 %s65, 1
    %p69 = scmp.eq.s32.totalorder %s10, 1
    %p70 = scmp.ne.s32.totalorder %s65, %s67
    %p71 = scmp.eq.s32.totalorder %s10, 0
    %p72 = por %p70, %p71
    %p73 = scmp.ne.s32.totalorder %s65, %s67
    %p74 = scmp.eq.s32.totalorder %s15, 1
    %p75 = por %p73, %p74
    %p76 = scmp.ne.s32.totalorder %s67, %s68
    %p77 = scmp.eq.s32.totalorder %s15, 0
    %p78 = por %p76, %p77
    %p79 = scmp.ne.s32.totalorder %s67, %s68
    %p80 = scmp.eq.s32.totalorder %s16, 1
    %p81 = por %p79, %p80
    %p83 = scmp.ne.s32.totalorder %s68, %s82
    %p84 = scmp.eq.s32.totalorder %s16, 0
    %p85 = por %p83, %p84
    %s87 = sadd.s32 %s86, 1
    %p90 = scmp.eq.s32.totalorder %s10, 1
    %p91 = scmp.ne.s32.totalorder %s86, %s88
    %p92 = scmp.eq.s32.totalorder %s10, 0
    %p93 = por %p91, %p92
    %p94 = scmp.ne.s32.totalorder %s86, %s88
    %p95 = scmp.eq.s32.totalorder %s15, 1
    %p96 = por %p94, %p95
    %p97 = scmp.ne.s32.totalorder %s88, %s89
    %p98 = scmp.eq.s32.totalorder %s15, 0
    %p99 = por %p97, %p98
    %p100 = scmp.ne.s32.totalorder %s88, %s89
    %p101 = scmp.eq.s32.totalorder %s16, 1
    %p102 = por %p100, %p101
    %p104 = scmp.ne.s32.totalorder %s89, %s103
    %p105 = scmp.eq.s32.totalorder %s16, 0
    %p106 = por %p104, %p105
    %s107 = ssub.s32 %s10, %s17
    %p108 = scmp.eq.s32.totalorder %s107, 0
    %s110 = sadd.s32 %s109, 1
    %s111 = scalar_select %p108, %s109, %s110
    %p114 = pneg %p108
    %p115 = scmp.eq.s32.totalorder %s10, 1
    %p116 = por %p114, %p115
    %p117 = scmp.ne.s32.totalorder %s109, %s112
    %p118 = scmp.eq.s32.totalorder %s10, 0
    %p119 = por %p117, %p118
    %p120 = scmp.ne.s32.totalorder %s109, %s112
    %p121 = scmp.eq.s32.totalorder %s15, 1
    %p122 = por %p120, %p121
    %p123 = scmp.ne.s32.totalorder %s112, %s113
    %p124 = scmp.eq.s32.totalorder %s15, 0
    %p125 = por %p123, %p124
    %p126 = scmp.ne.s32.totalorder %s112, %s113
    %p127 = scmp.eq.s32.totalorder %s16, 1
    %p128 = por %p126, %p127
    %p130 = scmp.ne.s32.totalorder %s113, %s129
    %p131 = scmp.eq.s32.totalorder %s16, 0
    %p132 = por %p130, %p131
    %p133 = scmp.le.s32.totalorder 1, %s10
    %p134 = scmp.lt.s32.totalorder %s10, 3
    %p135 = pnand %p133, %p134
    %p136 = pneg %p135
    // Predicated region
    $region9: #{tpu_custom_call.1} parent=5 // pred_check
      _
    $region10: #{tpu_custom_call.1} parent=5 // pred_check_branch
      %138 = sbr.rel (%p135) target = $region12
    $region11: #{tpu_custom_call.1} parent=5 // pred_region
      %s139 = ssub.s32 %s10, 1
      // Predicated region
      $region13: #{tpu_custom_call.1} parent=11 // pred_check
        %p140 = pneg %p57
      $region14: #{tpu_custom_call.1} parent=11 // pred_check_branch
        %142 = sbr.rel (%p140) target = $region16
      $region15: #{tpu_custom_call.1} parent=11 // pred_region
        _
      $region16: #{tpu_custom_call.1} parent=11 // pred_fallthru
        _
      // Predicated region
      $region17: #{tpu_custom_call.1} parent=11 // pred_check
        %p143 = pneg %p78
      $region18: #{tpu_custom_call.1} parent=11 // pred_check_branch
        %145 = sbr.rel (%p143) target = $region20
      $region19: #{tpu_custom_call.1} parent=11 // pred_region
        _
      $region20: #{tpu_custom_call.1} parent=11 // pred_fallthru
        _
      // Predicated region
      $region21: #{tpu_custom_call.1} parent=11 // pred_check
        %p146 = pneg %p99
      $region22: #{tpu_custom_call.1} parent=11 // pred_check_branch
        %148 = sbr.rel (%p146) target = $region24
      $region23: #{tpu_custom_call.1} parent=11 // pred_region
        _
      $region24: #{tpu_custom_call.1} parent=11 // pred_fallthru
        _
    $region12: #{tpu_custom_call.1} parent=5 // pred_fallthru
      _
    %p149 = scmp.lt.s32.totalorder %s10, 2
    // Predicated region
    $region25: #{tpu_custom_call.1} parent=5 // pred_check
      %p150 = pneg %p149
    $region26: #{tpu_custom_call.1} parent=5 // pred_check_branch
      %152 = sbr.rel (%p150) target = $region28
    $region27: #{tpu_custom_call.1} parent=5 // pred_region
      // Predicated region
      $region29: #{tpu_custom_call.1} parent=27 // pred_check
        %p153 = pneg %p30
      $region30: #{tpu_custom_call.1} parent=27 // pred_check_branch
        %155 = sbr.rel (%p153) target = $region32
      $region31: #{tpu_custom_call.1} parent=27 // pred_region
        %p156 = scmp.lt.s32.totalorder %s10, 1
        %s157 = scalar_select %p156, %s10, 1
        %s158 = smul.addr %s157, 2
        %s159 = smul.addr %s158, 8
        %s160 = scalar_lea.vmem %s0, %s159
      $region32: #{tpu_custom_call.1} parent=27 // pred_fallthru
        _
    $region28: #{tpu_custom_call.1} parent=5 // pred_fallthru
      _
    %p161 = scmp.le.s32.totalorder 1, %s10
    %p162 = scmp.lt.s32.totalorder %s10, 3
    %p163 = pnand %p161, %p162
    %p164 = pneg %p163
    // Predicated region
    $region33: #{tpu_custom_call.1} parent=5 // pred_check
      _
    $region34: #{tpu_custom_call.1} parent=5 // pred_check_branch
      %166 = sbr.rel (%p163) target = $region36
    $region35: #{tpu_custom_call.1} parent=5 // pred_region
      %s167 = ssub.s32 %s10, 1
      %p168 = scmp.lt.s32.totalorder %s15, 1
      %s169 = scalar_select %p168, %s15, 1
      %s170 = smul.addr %s169, 2
      %s171 = smul.addr %s170, 8
      %s172 = scalar_lea.vmem %s0, %s171
      %p173 = pneg %p36
      %p174 = pneg %p33
      %p175 = pneg %p57
      %p176 = pneg %p54
      %p177 = pneg %p78
      %p178 = pneg %p75
      %p179 = pneg %p99
      %p180 = pneg %p96
      %p181 = pneg %p125
      %p182 = pneg %p122
      %s183 = smul.u32 10, %s15
      %p184 = scmp.lt.s32.totalorder %s183, 19
      %s185 = scalar_select %p184, %s183, 19
      %s186 = smul.addr %s185, 8
      %s187 = scalar_lea.vmem %s4, %s186
      %p188 = scmp.lt.s32.totalorder %s15, 1
      %s189 = scalar_select %p188, %s15, 1
      %s190 = smul.addr %s189, 2
      %s191 = smul.addr %s190, 8
      %s192 = scalar_lea.vmem %s0, %s191
      %s193 = smul.u32 10, %s15
      %p194 = scmp.lt.s32.totalorder %s193, 19
      %s195 = scalar_select %p194, %s193, 19
      %s196 = smul.addr %s195, 8
      %s197 = scalar_lea.vmem %s4, %s196
      %s198 = smul.u32 10, %s15
      %v199 = vld [vmem:[%s192] sm:$0xff]
      %v200 = vld [vmem:[%s192 + $0x8] sm:$0xff]
      %201 = vxpose.xlu0.b32.start [1/16] %v199, 128
      %202 = vxpose.xlu0.b32.cont [2/16] %v200, 128
      %203 = vxpose.xlu0.b32.cont [3/16] 0.0, 128
      %204 = vxpose.xlu0.b32.cont [4/16] 0.0, 128
      %205 = vxpose.xlu0.b32.cont [5/16] 0.0, 128
      %206 = vxpose.xlu0.b32.cont [6/16] 0.0, 128
      %207 = vxpose.xlu0.b32.cont [7/16] 0.0, 128
      %208 = vxpose.xlu0.b32.cont [8/16] 0.0, 128
      %209 = vxpose.xlu0.b32.cont [9/16] 0.0, 128
      %210 = vxpose.xlu0.b32.cont [10/16] 0.0, 128
      %211 = vxpose.xlu0.b32.cont [11/16] 0.0, 128
      %212 = vxpose.xlu0.b32.cont [12/16] 0.0, 128
      %213 = vxpose.xlu0.b32.cont [13/16] 0.0, 128
      %214 = vxpose.xlu0.b32.cont [14/16] 0.0, 128
      %215 = vxpose.xlu0.b32.cont [15/16] 0.0, 128
      %216 = vxpose.xlu0.b32.end [16/16] 0.0, 128
      %v217 = vpop.trf.xlu0
      %v218 = vpop.trf.xlu0
      %v219 = vpop.trf.xlu0
      %v220 = vpop.trf.xlu0
      %v221 = vpop.trf.xlu0
      %v222 = vpop.trf.xlu0
      %v223 = vpop.trf.xlu0
      %v224 = vpop.trf.xlu0
      %v225 = vpop.trf.xlu0
      %v226 = vpop.trf.xlu0
      %v227 = vpop.trf.xlu0
      %v228 = vpop.trf.xlu0
      %v229 = vpop.trf.xlu0
      %v230 = vpop.trf.xlu0
      %v231 = vpop.trf.xlu0
      %v232 = vpop.trf.xlu0
      %v233 = vld [vmem:[%s1] sm:$0xff]
      %v234 = vld [vmem:[%s1 + $0x8] sm:$0xff]
      %vm235 = vcmask 130048
      %v237 = vsel %vm235, %v217, 0
      %v240 = vsel %vm235, %v218, 0
      %v243 = vsel %vm235, %v219, 0
      %v246 = vsel %vm235, %v220, 0
      %248 = vmatprep.subr.mxu0 0.0
      %249 = vmatpush1.msra.mxu0 %v233
      %250 = vmatprep.subr.mxu0 0.0
      %251 = vmatpush1.msra.mxu0 %v234
      %252 = vmatprep.subr.mxu0 0.0
      %253 = vmatpush1.msra.mxu0 0.0
      %254 = vmatprep.subr.mxu0 0.0
      %255 = vmatpush1.msra.mxu0 0.0
      %256 = vmatprep.subr.mxu0 0.0
      %257 = vmatpush1.msra.mxu0 0.0
      %258 = vmatprep.subr.mxu0 0.0
      %259 = vmatpush1.msra.mxu0 0.0
      %260 = vmatprep.subr.mxu0 0.0
      %261 = vmatpush1.msra.mxu0 0.0
      %262 = vmatprep.subr.mxu0 0.0
      %263 = vmatpush1.msra.mxu0 0.0
      %264 = vmatprep.subr.mxu0 0.0
      %265 = vmatpush1.msra.mxu0 0.0
      %266 = vmatprep.subr.mxu0 0.0
      %267 = vmatpush1.msra.mxu0 0.0
      %268 = vmatprep.subr.mxu0 0.0
      %269 = vmatpush1.msra.mxu0 0.0
      %270 = vmatprep.subr.mxu0 0.0
      %271 = vmatpush1.msra.mxu0 0.0
      %272 = vmatprep.subr.mxu0 0.0
      %273 = vmatpush1.msra.mxu0 0.0
      %274 = vmatprep.subr.mxu0 0.0
      %275 = vmatpush1.msra.mxu0 0.0
      %276 = vmatprep.subr.mxu0 0.0
      %277 = vmatpush1.msra.mxu0 0.0
      %278 = vmatprep.subr.mxu0 0.0
      %279 = vmatpush1.msra.mxu0 0.0
      %280 = vmatprep.subr.mxu0 0.0
      %281 = vmatpush1.msra.mxu0 0.0
      %282 = vmatprep.subr.mxu0 0.0
      %283 = vmatpush1.msra.mxu0 0.0
      %284 = vmatprep.subr.mxu0 0.0
      %285 = vmatpush1.msra.mxu0 0.0
      %286 = vmatprep.subr.mxu0 0.0
      %287 = vmatpush1.msra.mxu0 0.0
      %288 = vmatprep.subr.mxu0 0.0
      %289 = vmatpush1.msra.mxu0 0.0
      %290 = vmatprep.subr.mxu0 0.0
      %291 = vmatpush1.msra.mxu0 0.0
      %292 = vmatprep.subr.mxu0 0.0
      %293 = vmatpush1.msra.mxu0 0.0
      %294 = vmatprep.subr.mxu0 0.0
      %295 = vmatpush1.msra.mxu0 0.0
      %296 = vmatprep.subr.mxu0 0.0
      %297 = vmatpush1.msra.mxu0 0.0
      %298 = vmatprep.subr.mxu0 0.0
      %299 = vmatpush1.msra.mxu0 0.0
      %300 = vmatprep.subr.mxu0 0.0
      %301 = vmatpush1.msra.mxu0 0.0
      %302 = vmatprep.subr.mxu0 0.0
      %303 = vmatpush1.msra.mxu0 0.0
      %304 = vmatprep.subr.mxu0 0.0
      %305 = vmatpush1.msra.mxu0 0.0
      %306 = vmatprep.subr.mxu0 0.0
      %307 = vmatpush1.msra.mxu0 0.0
      %308 = vmatprep.subr.mxu0 0.0
      %309 = vmatpush1.msra.mxu0 0.0
      %310 = vmatprep.subr.mxu0 0.0
      %311 = vmatpush1.msra.mxu0 0.0
      %312 = vmatprep.mubr.f32.mxu0 0.0
      %313 = vmatmul.mubr.f32.gmra.mrb[0].mxu0 %v237
      %v314 = vpop.f32.mrb[0].mxu0
      %v315 = vadd.f32 0.0, %v314
      %v316 = vpop.f32.mrb[0].mxu0
      %317 = vmatprep.mubr.f32.mxu0 0.0
      %318 = vmatmul.mubr.f32.gmra.mrb[0].mxu0 %v240
      %v319 = vpop.f32.mrb[0].mxu0
      %v320 = vadd.f32 0.0, %v319
      %v321 = vpop.f32.mrb[0].mxu0
      %322 = vmatprep.mubr.f32.mxu0 0.0
      %323 = vmatmul.mubr.f32.gmra.mrb[0].mxu0 %v243
      %v324 = vpop.f32.mrb[0].mxu0
      %v325 = vadd.f32 0.0, %v324
      %v326 = vpop.f32.mrb[0].mxu0
      %327 = vmatprep.mubr.f32.mxu0 0.0
      %328 = vmatmul.mubr.f32.gmra.mrb[0].mxu0 %v246
      %v329 = vpop.f32.mrb[0].mxu0
      %v330 = vadd.f32 0.0, %v329
      %v331 = vpop.f32.mrb[0].mxu0
      %332 = vdwg.mxu0
      %v333 = vcombine.high %v315, 0.0
      %v335 = vunpack.c.l.s4 1983009808
      %v336 = vunpack.c.0.s8 %v335
      %v337 = vlaneseq
      %v338 = vshrl.u32 %v337, 7
      %v339 = vsub.s32 %v336, %v338
      %v340 = vrot.slane %v315, %v339
      %v342 = vunpack.c.l.s4 1983009808
      %v343 = vunpack.c.0.s8 %v342
      %v344 = vlaneseq
      %v345 = vshrl.u32 %v344, 7
      %v346 = vsub.s32 %v343, %v345
      %v347 = vrot.slane %v333, %v346
      %v348 = vcombine.high %v340, 0.0
      %v350 = vunpack.c.l.s4 1934713408
      %v351 = vunpack.c.0.s8 %v350
      %v352 = vlaneseq
      %v353 = vshrl.u32 %v352, 7
      %v354 = vsub.s32 %v351, %v353
      %v355 = vrot.slane %v340, %v354
      %v357 = vunpack.c.l.s4 1934713408
      %v358 = vunpack.c.0.s8 %v357
      %v359 = vlaneseq
      %v360 = vshrl.u32 %v359, 7
      %v361 = vsub.s32 %v358, %v360
      %v362 = vrot.slane %v348, %v361
      %v363 = vcombine.high %v347, 0.0
      %v365 = vunpack.c.l.s4 1934713408
      %v366 = vunpack.c.0.s8 %v365
      %v367 = vlaneseq
      %v368 = vshrl.u32 %v367, 7
      %v369 = vsub.s32 %v366, %v368
      %v370 = vrot.slane %v347, %v369
      %v372 = vunpack.c.l.s4 1934713408
      %v373 = vunpack.c.0.s8 %v372
      %v374 = vlaneseq
      %v375 = vshrl.u32 %v374, 7
      %v376 = vsub.s32 %v373, %v375
      %v377 = vrot.slane %v363, %v376
      %v378 = vcombine.high %v355, 0.0
      %v379 = vcombine.high %v362, 0.0
      %v380 = vcombine.high %v370, 0.0
      %v381 = vcombine.high %v377, 0.0
      %v382 = vcombine.high %v320, 0.0
      %v384 = vunpack.c.l.s4 1983009808
      %v385 = vunpack.c.0.s8 %v384
      %v386 = vlaneseq
      %v387 = vshrl.u32 %v386, 7
      %v388 = vsub.s32 %v385, %v387
      %v389 = vrot.slane %v320, %v388
      %v391 = vunpack.c.l.s4 1983009808
      %v392 = vunpack.c.0.s8 %v391
      %v393 = vlaneseq
      %v394 = vshrl.u32 %v393, 7
      %v395 = vsub.s32 %v392, %v394
      %v396 = vrot.slane %v382, %v395
      %v397 = vcombine.high %v389, 0.0
      %v399 = vunpack.c.l.s4 1934713408
      %v400 = vunpack.c.0.s8 %v399
      %v401 = vlaneseq
      %v402 = vshrl.u32 %v401, 7
      %v403 = vsub.s32 %v400, %v402
      %v404 = vrot.slane %v389, %v403
      %v406 = vunpack.c.l.s4 1934713408
      %v407 = vunpack.c.0.s8 %v406
      %v408 = vlaneseq
      %v409 = vshrl.u32 %v408, 7
      %v410 = vsub.s32 %v407, %v409
      %v411 = vrot.slane %v397, %v410
      %v412 = vcombine.high %v396, 0.0
      %v414 = vunpack.c.l.s4 1934713408
      %v415 = vunpack.c.0.s8 %v414
      %v416 = vlaneseq
      %v417 = vshrl.u32 %v416, 7
      %v418 = vsub.s32 %v415, %v417
      %v419 = vrot.slane %v396, %v418
      %v421 = vunpack.c.l.s4 1934713408
      %v422 = vunpack.c.0.s8 %v421
      %v423 = vlaneseq
      %v424 = vshrl.u32 %v423, 7
      %v425 = vsub.s32 %v422, %v424
      %v426 = vrot.slane %v412, %v425
      %v427 = vcombine.high %v404, 0.0
      %v428 = vcombine.high %v411, 0.0
      %v429 = vcombine.high %v419, 0.0
      %v430 = vcombine.high %v426, 0.0
      %v431 = vcombine.high %v325, 0.0
      %v433 = vunpack.c.l.s4 1983009808
      %v434 = vunpack.c.0.s8 %v433
      %v435 = vlaneseq
      %v436 = vshrl.u32 %v435, 7
      %v437 = vsub.s32 %v434, %v436
      %v438 = vrot.slane %v325, %v437
      %v440 = vunpack.c.l.s4 1983009808
      %v441 = vunpack.c.0.s8 %v440
      %v442 = vlaneseq
      %v443 = vshrl.u32 %v442, 7
      %v444 = vsub.s32 %v441, %v443
      %v445 = vrot.slane %v431, %v444
      %v446 = vcombine.high %v438, 0.0
      %v448 = vunpack.c.l.s4 1934713408
      %v449 = vunpack.c.0.s8 %v448
      %v450 = vlaneseq
      %v451 = vshrl.u32 %v450, 7
      %v452 = vsub.s32 %v449, %v451
      %v453 = vrot.slane %v438, %v452
      %v455 = vunpack.c.l.s4 1934713408
      %v456 = vunpack.c.0.s8 %v455
      %v457 = vlaneseq
      %v458 = vshrl.u32 %v457, 7
      %v459 = vsub.s32 %v456, %v458
      %v460 = vrot.slane %v446, %v459
      %v461 = vcombine.high %v445, 0.0
      %v463 = vunpack.c.l.s4 1934713408
      %v464 = vunpack.c.0.s8 %v463
      %v465 = vlaneseq
      %v466 = vshrl.u32 %v465, 7
      %v467 = vsub.s32 %v464, %v466
      %v468 = vrot.slane %v445, %v467
      %v470 = vunpack.c.l.s4 1934713408
      %v471 = vunpack.c.0.s8 %v470
      %v472 = vlaneseq
      %v473 = vshrl.u32 %v472, 7
      %v474 = vsub.s32 %v471, %v473
      %v475 = vrot.slane %v461, %v474
      %v476 = vcombine.high %v453, 0.0
      %v477 = vcombine.high %v460, 0.0
      %v478 = vcombine.high %v468, 0.0
      %v479 = vcombine.high %v475, 0.0
      %v480 = vcombine.high %v330, 0.0
      %v482 = vunpack.c.l.s4 1983009808
      %v483 = vunpack.c.0.s8 %v482
      %v484 = vlaneseq
      %v485 = vshrl.u32 %v484, 7
      %v486 = vsub.s32 %v483, %v485
      %v487 = vrot.slane %v330, %v486
      %v489 = vunpack.c.l.s4 1983009808
      %v490 = vunpack.c.0.s8 %v489
      %v491 = vlaneseq
      %v492 = vshrl.u32 %v491, 7
      %v493 = vsub.s32 %v490, %v492
      %v494 = vrot.slane %v480, %v493
      %v495 = vcombine.high %v487, 0.0
      %v497 = vunpack.c.l.s4 1934713408
      %v498 = vunpack.c.0.s8 %v497
      %v499 = vlaneseq
      %v500 = vshrl.u32 %v499, 7
      %v501 = vsub.s32 %v498, %v500
      %v502 = vrot.slane %v487, %v501
      %v504 = vunpack.c.l.s4 1934713408
      %v505 = vunpack.c.0.s8 %v504
      %v506 = vlaneseq
      %v507 = vshrl.u32 %v506, 7
      %v508 = vsub.s32 %v505, %v507
      %v509 = vrot.slane %v495, %v508
      %v510 = vcombine.high %v494, 0.0
      %v512 = vunpack.c.l.s4 1934713408
      %v513 = vunpack.c.0.s8 %v512
      %v514 = vlaneseq
      %v515 = vshrl.u32 %v514, 7
      %v516 = vsub.s32 %v513, %v515
      %v517 = vrot.slane %v494, %v516
      %v519 = vunpack.c.l.s4 1934713408
      %v520 = vunpack.c.0.s8 %v519
      %v521 = vlaneseq
      %v522 = vshrl.u32 %v521, 7
      %v523 = vsub.s32 %v520, %v522
      %v524 = vrot.slane %v510, %v523
      %v525 = vcombine.high %v502, 0.0
      %v526 = vcombine.high %v509, 0.0
      %v527 = vcombine.high %v517, 0.0
      %v528 = vcombine.high %v524, 0.0
      %v529 = vld [vmem:[%s2] sm:$0xff]
      %v530 = vld [vmem:[%s2 + $0x8] sm:$0xff]
      %v531 = vld [vmem:[%s2 + $0x10] sm:$0xff]
      %v532 = vld [vmem:[%s2 + $0x18] sm:$0xff]
      %v533 = vld [vmem:[%s2 + $0x20] sm:$0xff]
      %v534 = vld [vmem:[%s2 + $0x28] sm:$0xff]
      %v535 = vld [vmem:[%s2 + $0x30] sm:$0xff]
      %v536 = vld [vmem:[%s2 + $0x38] sm:$0xff]
      %v537 = vld [vmem:[%s2 + $0x40] sm:$0xff]
      %v538 = vld [vmem:[%s2 + $0x48] sm:$0xff]
      %v539 = vld [vmem:[%s3] sm:$0xff]
      %v540 = vld [vmem:[%s3 + $0x8] sm:$0xff]
      %v541 = vld [vmem:[%s3 + $0x10] sm:$0xff]
      %v542 = vld [vmem:[%s3 + $0x18] sm:$0xff]
      %v543 = vld [vmem:[%s3 + $0x20] sm:$0xff]
      %v544 = vld [vmem:[%s3 + $0x28] sm:$0xff]
      %v545 = vld [vmem:[%s3 + $0x30] sm:$0xff]
      %v546 = vld [vmem:[%s3 + $0x38] sm:$0xff]
      %v547 = vld [vmem:[%s3 + $0x40] sm:$0xff]
      %v548 = vld [vmem:[%s3 + $0x48] sm:$0xff]
      %v581 = vrot.slane %v378, 7
      %vm582 = vcmask 1041409
      %v583 = vsel %vm582, %v581, %v355
      %v584 = vrot.slane %v362, 6
      %vm585 = vcmask 1042434
      %v586 = vsel %vm585, %v584, %v583
      %v587 = vrot.slane %v379, 5
      %vm588 = vcmask 1043459
      %v589 = vsel %vm588, %v587, %v586
      %v590 = vrot.slane %v370, 4
      %vm591 = vcmask 1044484
      %v592 = vsel %vm591, %v590, %v589
      %v593 = vrot.slane %v380, 3
      %vm594 = vcmask 1045509
      %v595 = vsel %vm594, %v593, %v592
      %v596 = vrot.slane %v377, 2
      %vm597 = vcmask 1046534
      %v598 = vsel %vm597, %v596, %v595
      %v599 = vrot.slane %v381, 1
      %vm600 = vcmask 1047559
      %v601 = vsel %vm600, %v599, %v598
      %v602 = vrot.slane %v427, 7
      %v603 = vsel %vm582, %v602, %v404
      %v604 = vrot.slane %v411, 6
      %v605 = vsel %vm585, %v604, %v603
      %v606 = vrot.slane %v428, 5
      %v607 = vsel %vm588, %v606, %v605
      %v608 = vrot.slane %v419, 4
      %v609 = vsel %vm591, %v608, %v607
      %v610 = vrot.slane %v429, 3
      %v611 = vsel %vm594, %v610, %v609
      %v612 = vrot.slane %v426, 2
      %v613 = vsel %vm597, %v612, %v611
      %v614 = vrot.slane %v430, 1
      %v615 = vsel %vm600, %v614, %v613
      %v616 = vrot.slane %v476, 7
      %v617 = vsel %vm582, %v616, %v453
      %v618 = vrot.slane %v460, 6
      %v619 = vsel %vm585, %v618, %v617
      %v620 = vrot.slane %v477, 5
      %v621 = vsel %vm588, %v620, %v619
      %v622 = vrot.slane %v468, 4
      %v623 = vsel %vm591, %v622, %v621
      %v624 = vrot.slane %v478, 3
      %v625 = vsel %vm594, %v624, %v623
      %v626 = vrot.slane %v475, 2
      %v627 = vsel %vm597, %v626, %v625
      %v628 = vrot.slane %v479, 1
      %v629 = vsel %vm600, %v628, %v627
      %v630 = vrot.slane %v525, 7
      %v631 = vsel %vm582, %v630, %v502
      %v632 = vrot.slane %v509, 6
      %v633 = vsel %vm585, %v632, %v631
      %v634 = vrot.slane %v526, 5
      %v635 = vsel %vm588, %v634, %v633
      %v636 = vrot.slane %v517, 4
      %v637 = vsel %vm591, %v636, %v635
      %v638 = vrot.slane %v527, 3
      %v639 = vsel %vm594, %v638, %v637
      %v640 = vrot.slane %v524, 2
      %v641 = vsel %vm597, %v640, %v639
      %v642 = vrot.slane %v528, 1
      %v643 = vsel %vm600, %v642, %v641
      %vm648 = vcmask 261120
      %v650 = vsel %vm648, %v529, 0
      %v653 = vsel %vm648, %v530, 0
      %v656 = vsel %vm648, %v531, 0
      %v659 = vsel %vm648, %v532, 0
      %v662 = vsel %vm648, %v533, 0
      %v665 = vsel %vm648, %v534, 0
      %v668 = vsel %vm648, %v535, 0
      %v671 = vsel %vm648, %v536, 0
      %v674 = vsel %vm648, %v537, 0
      %v677 = vsel %vm648, %v538, 0
      %679 = vmatprep.subr.mxu0 0.0
      %680 = vmatpush1.msra.mxu0 %v601
      %681 = vmatprep.subr.mxu0 0.0
      %682 = vmatpush1.msra.mxu0 %v615
      %683 = vmatprep.subr.mxu0 0.0
      %684 = vmatpush1.msra.mxu0 %v629
      %685 = vmatprep.subr.mxu0 0.0
      %686 = vmatpush1.msra.mxu0 %v643
      %687 = vmatprep.subr.mxu0 0.0
      %688 = vmatpush1.msra.mxu0 0.0
      %689 = vmatprep.subr.mxu0 0.0
      %690 = vmatpush1.msra.mxu0 0.0
      %691 = vmatprep.subr.mxu0 0.0
      %692 = vmatpush1.msra.mxu0 0.0
      %693 = vmatprep.subr.mxu0 0.0
      %694 = vmatpush1.msra.mxu0 0.0
      %695 = vmatprep.subr.mxu0 0.0
      %696 = vmatpush1.msra.mxu0 0.0
      %697 = vmatprep.subr.mxu0 0.0
      %698 = vmatpush1.msra.mxu0 0.0
      %699 = vmatprep.subr.mxu0 0.0
      %700 = vmatpush1.msra.mxu0 0.0
      %701 = vmatprep.subr.mxu0 0.0
      %702 = vmatpush1.msra.mxu0 0.0
      %703 = vmatprep.subr.mxu0 0.0
      %704 = vmatpush1.msra.mxu0 0.0
      %705 = vmatprep.subr.mxu0 0.0
      %706 = vmatpush1.msra.mxu0 0.0
      %707 = vmatprep.subr.mxu0 0.0
      %708 = vmatpush1.msra.mxu0 0.0
      %709 = vmatprep.subr.mxu0 0.0
      %710 = vmatpush1.msra.mxu0 0.0
      %711 = vmatprep.subr.mxu0 0.0
      %712 = vmatpush1.msra.mxu0 0.0
      %713 = vmatprep.subr.mxu0 0.0
      %714 = vmatpush1.msra.mxu0 0.0
      %715 = vmatprep.subr.mxu0 0.0
      %716 = vmatpush1.msra.mxu0 0.0
      %717 = vmatprep.subr.mxu0 0.0
      %718 = vmatpush1.msra.mxu0 0.0
      %719 = vmatprep.subr.mxu0 0.0
      %720 = vmatpush1.msra.mxu0 0.0
      %721 = vmatprep.subr.mxu0 0.0
      %722 = vmatpush1.msra.mxu0 0.0
      %723 = vmatprep.subr.mxu0 0.0
      %724 = vmatpush1.msra.mxu0 0.0
      %725 = vmatprep.subr.mxu0 0.0
      %726 = vmatpush1.msra.mxu0 0.0
      %727 = vmatprep.subr.mxu0 0.0
      %728 = vmatpush1.msra.mxu0 0.0
      %729 = vmatprep.subr.mxu0 0.0
      %730 = vmatpush1.msra.mxu0 0.0
      %731 = vmatprep.subr.mxu0 0.0
      %732 = vmatpush1.msra.mxu0 0.0
      %733 = vmatprep.subr.mxu0 0.0
      %734 = vmatpush1.msra.mxu0 0.0
      %735 = vmatprep.subr.mxu0 0.0
      %736 = vmatpush1.msra.mxu0 0.0
      %737 = vmatprep.subr.mxu0 0.0
      %738 = vmatpush1.msra.mxu0 0.0
      %739 = vmatprep.subr.mxu0 0.0
      %740 = vmatpush1.msra.mxu0 0.0
      %741 = vmatprep.subr.mxu0 0.0
      %742 = vmatpush1.msra.mxu0 0.0
      %743 = vmatprep.mubr.f32.mxu0 0.0
      %744 = vmatmul.mubr.f32.gmra.mrb[0].mxu0 %v650
      %v745 = vpop.f32.mrb[0].mxu0
      %v746 = vadd.f32 %v539, %v745
      %v747 = vpop.f32.mrb[0].mxu0
      %748 = vmatprep.mubr.f32.mxu0 0.0
      %749 = vmatmul.mubr.f32.gmra.mrb[0].mxu0 %v653
      %v750 = vpop.f32.mrb[0].mxu0
      %v751 = vadd.f32 %v540, %v750
      %v752 = vpop.f32.mrb[0].mxu0
      %753 = vmatprep.mubr.f32.mxu0 0.0
      %754 = vmatmul.mubr.f32.gmra.mrb[0].mxu0 %v656
      %v755 = vpop.f32.mrb[0].mxu0
      %v756 = vadd.f32 %v541, %v755
      %v757 = vpop.f32.mrb[0].mxu0
      %758 = vmatprep.mubr.f32.mxu0 0.0
      %759 = vmatmul.mubr.f32.gmra.mrb[0].mxu0 %v659
      %v760 = vpop.f32.mrb[0].mxu0
      %v761 = vadd.f32 %v542, %v760
      %v762 = vpop.f32.mrb[0].mxu0
      %763 = vmatprep.mubr.f32.mxu0 0.0
      %764 = vmatmul.mubr.f32.gmra.mrb[0].mxu0 %v662
      %v765 = vpop.f32.mrb[0].mxu0
      %v766 = vadd.f32 %v543, %v765
      %v767 = vpop.f32.mrb[0].mxu0
      %768 = vmatprep.mubr.f32.mxu0 0.0
      %769 = vmatmul.mubr.f32.gmra.mrb[0].mxu0 %v665
      %v770 = vpop.f32.mrb[0].mxu0
      %v771 = vadd.f32 %v544, %v770
      %v772 = vpop.f32.mrb[0].mxu0
      %773 = vmatprep.mubr.f32.mxu0 0.0
      %774 = vmatmul.mubr.f32.gmra.mrb[0].mxu0 %v668
      %v775 = vpop.f32.mrb[0].mxu0
      %v776 = vadd.f32 %v545, %v775
      %v777 = vpop.f32.mrb[0].mxu0
      %778 = vmatprep.mubr.f32.mxu0 0.0
      %779 = vmatmul.mubr.f32.gmra.mrb[0].mxu0 %v671
      %v780 = vpop.f32.mrb[0].mxu0
      %v781 = vadd.f32 %v546, %v780
      %v782 = vpop.f32.mrb[0].mxu0
      %783 = vmatprep.mubr.f32.mxu0 0.0
      %784 = vmatmul.mubr.f32.gmra.mrb[0].mxu0 %v674
      %v785 = vpop.f32.mrb[0].mxu0
      %v786 = vadd.f32 %v547, %v785
      %v787 = vpop.f32.mrb[0].mxu0
      %788 = vmatprep.mubr.f32.mxu0 0.0
      %789 = vmatmul.mubr.f32.gmra.mrb[0].mxu0 %v677
      %v790 = vpop.f32.mrb[0].mxu0
      %v791 = vadd.f32 %v548, %v790
      %v792 = vpop.f32.mrb[0].mxu0
      %793 = vdwg.mxu0
      %v794 = vsub.f32 0.0, %v746
      %v795 = vsub.f32 0.0, %v751
      %v796 = vmul.f32 %v794, 1.442695
      %v797 = vpow.pop %v796
      %v798 = vmul.f32 %v795, 1.442695
      %v799 = vpow.pop %v798
      %v800 = vadd.f32 %v797, 1.0
      %v801 = vadd.f32 %v799, 1.0
      %v802 = vrcp.pop %v800
      %v803 = vrcp.pop %v801
      %v804 = vmul.f32 %v802, 1.5707964
      %v805 = vmul.f32 %v803, 1.5707964
      %v806 = vand.u32 2147483647, %v804
      %vm807 = vcmp.le.f32.partialorder %v806, 0.7853982
      %vm808 = vcmp.lt.s32.totalorder %v804, 0
      %v809 = vand.u32 %v804, 2139095040
      %v810 = vshrl.u32 %v809, 23
      %v811 = vsub.s32 %v810, 127
      %v812 = vand.u32 2147483647, %v804
      %v813 = vand.u32 %v812, 8388607
      %v814 = vor.u32 %v813, 8388608
      %v815 = vsub.s32 0, %v814
      %v816 = vadd.s32 %v811, 1
      %vm817 = vcmp.gt.s32.totalorder %v816, 0
      %v818 = vsel %vm817, %v816, 0
      %v819 = vshrl.u32 %v818, 5
      %v820 = vand.u32 %v818, 31
      %v821 = vsub.s32 32, %v820
      %v822 = vshrl.u32 683565275, %v821
      %v823 = vshll.u32 683565275, %v820
      %v824 = vshrl.u32 2475754826, %v821
      %v825 = vor.u32 %v823, %v824
      %v826 = vshll.u32 2475754826, %v820
      %v827 = vshrl.u32 2131351028, %v821
      %v828 = vor.u32 %v826, %v827
      %v829 = vshll.u32 2131351028, %v820
      %v830 = vshrl.u32 2102212464, %v821
      %v831 = vor.u32 %v829, %v830
      %v832 = vshll.u32 2102212464, %v820
      %v833 = vshrl.u32 920167782, %v821
      %v834 = vor.u32 %v832, %v833
      %v835 = vshll.u32 920167782, %v820
      %v836 = vshrl.u32 1326507024, %v821
      %v837 = vor.u32 %v835, %v836
      %vm838 = vcmp.lt.s32.totalorder %v819, 1
      %vm839 = vcmp.lt.s32.totalorder %v819, 2
      %vm840 = vcmp.lt.s32.totalorder %v819, 3
      %vm841 = vcmp.lt.s32.totalorder %v819, 4
      %v842 = vsel %vm838, %v822, %v825
      %v843 = vsel %vm841, %v831, 2102212464
      %v844 = vsel %vm840, %v828, %v843
      %v845 = vsel %vm839, %v842, %v844
      %v846 = vsel %vm838, %v825, %v828
      %v847 = vsel %vm841, %v834, 920167782
      %v848 = vsel %vm840, %v831, %v847
      %v849 = vsel %vm839, %v846, %v848
      %v850 = vsel %vm838, %v828, %v831
      %v851 = vsel %vm841, %v837, 1326507024
      %v852 = vsel %vm840, %v834, %v851
      %v853 = vsel %vm839, %v850, %v852
      %v854 = vshll.u32 %v814, 8
      %v855 = vmul.u32.u64.compose %v854, %v853
      %v856 = vextract.low.u32 %v855
      %v857 = vextract.high.u32 %v855
      %v858 = vmul.u32.u64.compose %v854, %v849
      %v859 = vextract.low.u32 %v858
      %v860 = vextract.high.u32 %v858
      %v861 = vmul.u32 %v854, %v845
      %v862 = vadd.s32 %v857, %v859
      %vm863 = vc.u32 %v857, %v859
      %v864 = vadd.s32 %v860, 1
      %v865 = vsel %vm863, %v864, %v860
      %v866 = vadd.s32 %v861, %v865
      %v867 = vadd.s32 %v866, 536870912
      %v868 = vshrl.u32 %v867, 30
      %v869 = vshll.u32 %v868, 30
      %v870 = vsub.s32 %v866, %v869
      %vm871 = vcmp.lt.s32.totalorder %v870, 0
      %v872 = vsub.s32 0, %v870
      %v873 = vsel %vm871, %v872, %v870
      %v874 = vclz %v873
      %v875 = vsub.s32 %v874, 2
      %vm876 = vcmp.gt.s32.totalorder 0, %v875
      %v877 = vsel %vm876, 0, %v875
      %v878 = vsub.s32 32, %v877
      %v879 = vshll.u32 %v870, %v877
      %v880 = vshrl.u32 %v862, %v878
      %v881 = vor.u32 %v879, %v880
      %v882 = vsub.s32 4294967266, %v877
      %v883 = vadd.s32 %v882, 127
      %v884 = vshll.u32 %v883, 23
      %v885 = vor.u32 4788187, %v884
      %v886 = vand.u32 2147483647, %v885
      %v888 = vcvt.s32.f32 %v881
      %v889 = vmul.f32 %v888, %v886
      %v890 = vxor.u32 %v889, 2147483648
      %v891 = vsel %vm808, %v890, %v889
      %v892 = vsub.s32 4, %v868
      %v893 = vsel %vm808, %v892, %v868
      %v894 = vsel %vm807, %v804, %v891
      %v895 = vsel %vm807, 0, %v893
      %v896 = vcosq.f32.pop %v894
      %v897 = vsinq.f32.pop %v894
      %vm898 = vweird.f32 %v804
      %v899 = vadd.s32 %v895, 3
      %v900 = vand.u32 %v899, 3
      %vm901 = vcmp.lt.s32.totalorder %v900, 2
      %vm902 = vcmp.eq.s32.totalorder %v900, 0
      %v903 = vxor.u32 %v897, 2147483648
      %v904 = vsel %vm902, %v896, %v903
      %vm905 = vcmp.eq.s32.totalorder %v900, 2
      %v906 = vxor.u32 %v896, 2147483648
      %v907 = vsel %vm905, %v906, %v897
      %v908 = vsel %vm901, %v904, %v907
      %v909 = vsel %vm898, nan, %v908
      %v910 = vand.u32 2147483647, %v805
      %vm911 = vcmp.le.f32.partialorder %v910, 0.7853982
      %vm912 = vcmp.lt.s32.totalorder %v805, 0
      %v913 = vand.u32 %v805, 2139095040
      %v914 = vshrl.u32 %v913, 23
      %v915 = vsub.s32 %v914, 127
      %v916 = vand.u32 2147483647, %v805
      %v917 = vand.u32 %v916, 8388607
      %v918 = vor.u32 %v917, 8388608
      %v919 = vsub.s32 0, %v918
      %v920 = vadd.s32 %v915, 1
      %vm921 = vcmp.gt.s32.totalorder %v920, 0
      %v922 = vsel %vm921, %v920, 0
      %v923 = vshrl.u32 %v922, 5
      %v924 = vand.u32 %v922, 31
      %v925 = vsub.s32 32, %v924
      %v926 = vshrl.u32 683565275, %v925
      %v927 = vshll.u32 683565275, %v924
      %v928 = vshrl.u32 2475754826, %v925
      %v929 = vor.u32 %v927, %v928
      %v930 = vshll.u32 2475754826, %v924
      %v931 = vshrl.u32 2131351028, %v925
      %v932 = vor.u32 %v930, %v931
      %v933 = vshll.u32 2131351028, %v924
      %v934 = vshrl.u32 2102212464, %v925
      %v935 = vor.u32 %v933, %v934
      %v936 = vshll.u32 2102212464, %v924
      %v937 = vshrl.u32 920167782, %v925
      %v938 = vor.u32 %v936, %v937
      %v939 = vshll.u32 920167782, %v924
      %v940 = vshrl.u32 1326507024, %v925
      %v941 = vor.u32 %v939, %v940
      %vm942 = vcmp.lt.s32.totalorder %v923, 1
      %vm943 = vcmp.lt.s32.totalorder %v923, 2
      %vm944 = vcmp.lt.s32.totalorder %v923, 3
      %vm945 = vcmp.lt.s32.totalorder %v923, 4
      %v946 = vsel %vm942, %v926, %v929
      %v947 = vsel %vm945, %v935, 2102212464
      %v948 = vsel %vm944, %v932, %v947
      %v949 = vsel %vm943, %v946, %v948
      %v950 = vsel %vm942, %v929, %v932
      %v951 = vsel %vm945, %v938, 920167782
      %v952 = vsel %vm944, %v935, %v951
      %v953 = vsel %vm943, %v950, %v952
      %v954 = vsel %vm942, %v932, %v935
      %v955 = vsel %vm945, %v941, 1326507024
      %v956 = vsel %vm944, %v938, %v955
      %v957 = vsel %vm943, %v954, %v956
      %v958 = vshll.u32 %v918, 8
      %v959 = vmul.u32.u64.compose %v958, %v957
      %v960 = vextract.low.u32 %v959
      %v961 = vextract.high.u32 %v959
      %v962 = vmul.u32.u64.compose %v958, %v953
      %v963 = vextract.low.u32 %v962
      %v964 = vextract.high.u32 %v962
      %v965 = vmul.u32 %v958, %v949
      %v966 = vadd.s32 %v961, %v963
      %vm967 = vc.u32 %v961, %v963
      %v968 = vadd.s32 %v964, 1
      %v969 = vsel %vm967, %v968, %v964
      %v970 = vadd.s32 %v965, %v969
      %v971 = vadd.s32 %v970, 536870912
      %v972 = vshrl.u32 %v971, 30
      %v973 = vshll.u32 %v972, 30
      %v974 = vsub.s32 %v970, %v973
      %vm975 = vcmp.lt.s32.totalorder %v974, 0
      %v976 = vsub.s32 0, %v974
      %v977 = vsel %vm975, %v976, %v974
      %v978 = vclz %v977
      %v979 = vsub.s32 %v978, 2
      %vm980 = vcmp.gt.s32.totalorder 0, %v979
      %v981 = vsel %vm980, 0, %v979
      %v982 = vsub.s32 32, %v981
      %v983 = vshll.u32 %v974, %v981
      %v984 = vshrl.u32 %v966, %v982
      %v985 = vor.u32 %v983, %v984
      %v986 = vsub.s32 4294967266, %v981
      %v987 = vadd.s32 %v986, 127
      %v988 = vshll.u32 %v987, 23
      %v989 = vor.u32 4788187, %v988
      %v990 = vand.u32 2147483647, %v989
      %v992 = vcvt.s32.f32 %v985
      %v993 = vmul.f32 %v992, %v990
      %v994 = vxor.u32 %v993, 2147483648
      %v995 = vsel %vm912, %v994, %v993
      %v996 = vsub.s32 4, %v972
      %v997 = vsel %vm912, %v996, %v972
      %v998 = vsel %vm911, %v805, %v995
      %v999 = vsel %vm911, 0, %v997
      %v1000 = vcosq.f32.pop %v998
      %v1001 = vsinq.f32.pop %v998
      %vm1002 = vweird.f32 %v805
      %v1003 = vadd.s32 %v999, 3
      %v1004 = vand.u32 %v1003, 3
      %vm1005 = vcmp.lt.s32.totalorder %v1004, 2
      %vm1006 = vcmp.eq.s32.totalorder %v1004, 0
      %v1007 = vxor.u32 %v1001, 2147483648
      %v1008 = vsel %vm1006, %v1000, %v1007
      %vm1009 = vcmp.eq.s32.totalorder %v1004, 2
      %v1010 = vxor.u32 %v1000, 2147483648
      %v1011 = vsel %vm1009, %v1010, %v1001
      %v1012 = vsel %vm1005, %v1008, %v1011
      %v1013 = vsel %vm1002, nan, %v1012
      %v1014 = vand.u32 2147483647, %v804
      %vm1015 = vcmp.le.f32.partialorder %v1014, 0.7853982
      %vm1016 = vcmp.lt.s32.totalorder %v804, 0
      %v1017 = vand.u32 %v804, 2139095040
      %v1018 = vshrl.u32 %v1017, 23
      %v1019 = vsub.s32 %v1018, 127
      %v1020 = vand.u32 2147483647, %v804
      %v1021 = vand.u32 %v1020, 8388607
      %v1022 = vor.u32 %v1021, 8388608
      %v1023 = vsub.s32 0, %v1022
      %v1024 = vadd.s32 %v1019, 1
      %vm1025 = vcmp.gt.s32.totalorder %v1024, 0
      %v1026 = vsel %vm1025, %v1024, 0
      %v1027 = vshrl.u32 %v1026, 5
      %v1028 = vand.u32 %v1026, 31
      %v1029 = vsub.s32 32, %v1028
      %v1030 = vshrl.u32 683565275, %v1029
      %v1031 = vshll.u32 683565275, %v1028
      %v1032 = vshrl.u32 2475754826, %v1029
      %v1033 = vor.u32 %v1031, %v1032
      %v1034 = vshll.u32 2475754826, %v1028
      %v1035 = vshrl.u32 2131351028, %v1029
      %v1036 = vor.u32 %v1034, %v1035
      %v1037 = vshll.u32 2131351028, %v1028
      %v1038 = vshrl.u32 2102212464, %v1029
      %v1039 = vor.u32 %v1037, %v1038
      %v1040 = vshll.u32 2102212464, %v1028
      %v1041 = vshrl.u32 920167782, %v1029
      %v1042 = vor.u32 %v1040, %v1041
      %v1043 = vshll.u32 920167782, %v1028
      %v1044 = vshrl.u32 1326507024, %v1029
      %v1045 = vor.u32 %v1043, %v1044
      %vm1046 = vcmp.lt.s32.totalorder %v1027, 1
      %vm1047 = vcmp.lt.s32.totalorder %v1027, 2
      %vm1048 = vcmp.lt.s32.totalorder %v1027, 3
      %vm1049 = vcmp.lt.s32.totalorder %v1027, 4
      %v1050 = vsel %vm1046, %v1030, %v1033
      %v1051 = vsel %vm1049, %v1039, 2102212464
      %v1052 = vsel %vm1048, %v1036, %v1051
      %v1053 = vsel %vm1047, %v1050, %v1052
      %v1054 = vsel %vm1046, %v1033, %v1036
      %v1055 = vsel %vm1049, %v1042, 920167782
      %v1056 = vsel %vm1048, %v1039, %v1055
      %v1057 = vsel %vm1047, %v1054, %v1056
      %v1058 = vsel %vm1046, %v1036, %v1039
      %v1059 = vsel %vm1049, %v1045, 1326507024
      %v1060 = vsel %vm1048, %v1042, %v1059
      %v1061 = vsel %vm1047, %v1058, %v1060
      %v1062 = vshll.u32 %v1022, 8
      %v1063 = vmul.u32.u64.compose %v1062, %v1061
      %v1064 = vextract.low.u32 %v1063
      %v1065 = vextract.high.u32 %v1063
      %v1066 = vmul.u32.u64.compose %v1062, %v1057
      %v1067 = vextract.low.u32 %v1066
      %v1068 = vextract.high.u32 %v1066
      %v1069 = vmul.u32 %v1062, %v1053
      %v1070 = vadd.s32 %v1065, %v1067
      %vm1071 = vc.u32 %v1065, %v1067
      %v1072 = vadd.s32 %v1068, 1
      %v1073 = vsel %vm1071, %v1072, %v1068
      %v1074 = vadd.s32 %v1069, %v1073
      %v1075 = vadd.s32 %v1074, 536870912
      %v1076 = vshrl.u32 %v1075, 30
      %v1077 = vshll.u32 %v1076, 30
      %v1078 = vsub.s32 %v1074, %v1077
      %vm1079 = vcmp.lt.s32.totalorder %v1078, 0
      %v1080 = vsub.s32 0, %v1078
      %v1081 = vsel %vm1079, %v1080, %v1078
      %v1082 = vclz %v1081
      %v1083 = vsub.s32 %v1082, 2
      %vm1084 = vcmp.gt.s32.totalorder 0, %v1083
      %v1085 = vsel %vm1084, 0, %v1083
      %v1086 = vsub.s32 32, %v1085
      %v1087 = vshll.u32 %v1078, %v1085
      %v1088 = vshrl.u32 %v1070, %v1086
      %v1089 = vor.u32 %v1087, %v1088
      %v1090 = vsub.s32 4294967266, %v1085
      %v1091 = vadd.s32 %v1090, 127
      %v1092 = vshll.u32 %v1091, 23
      %v1093 = vor.u32 4788187, %v1092
      %v1094 = vand.u32 2147483647, %v1093
      %v1096 = vcvt.s32.f32 %v1089
      %v1097 = vmul.f32 %v1096, %v1094
      %v1098 = vxor.u32 %v1097, 2147483648
      %v1099 = vsel %vm1016, %v1098, %v1097
      %v1100 = vsub.s32 4, %v1076
      %v1101 = vsel %vm1016, %v1100, %v1076
      %v1102 = vsel %vm1015, %v804, %v1099
      %v1103 = vsel %vm1015, 0, %v1101
      %v1104 = vcosq.f32.pop %v1102
      %v1105 = vsinq.f32.pop %v1102
      %vm1106 = vweird.f32 %v804
      %v1107 = vand.u32 %v1103, 3
      %vm1108 = vcmp.lt.s32.totalorder %v1107, 2
      %vm1109 = vcmp.eq.s32.totalorder %v1107, 0
      %v1110 = vxor.u32 %v1105, 2147483648
      %v1111 = vsel %vm1109, %v1104, %v1110
      %vm1112 = vcmp.eq.s32.totalorder %v1107, 2
      %v1113 = vxor.u32 %v1104, 2147483648
      %v1114 = vsel %vm1112, %v1113, %v1105
      %v1115 = vsel %vm1108, %v1111, %v1114
      %v1116 = vsel %vm1106, nan, %v1115
      %v1117 = vand.u32 2147483647, %v805
      %vm1118 = vcmp.le.f32.partialorder %v1117, 0.7853982
      %vm1119 = vcmp.lt.s32.totalorder %v805, 0
      %v1120 = vand.u32 %v805, 2139095040
      %v1121 = vshrl.u32 %v1120, 23
      %v1122 = vsub.s32 %v1121, 127
      %v1123 = vand.u32 2147483647, %v805
      %v1124 = vand.u32 %v1123, 8388607
      %v1125 = vor.u32 %v1124, 8388608
      %v1126 = vsub.s32 0, %v1125
      %v1127 = vadd.s32 %v1122, 1
      %vm1128 = vcmp.gt.s32.totalorder %v1127, 0
      %v1129 = vsel %vm1128, %v1127, 0
      %v1130 = vshrl.u32 %v1129, 5
      %v1131 = vand.u32 %v1129, 31
      %v1132 = vsub.s32 32, %v1131
      %v1133 = vshrl.u32 683565275, %v1132
      %v1134 = vshll.u32 683565275, %v1131
      %v1135 = vshrl.u32 2475754826, %v1132
      %v1136 = vor.u32 %v1134, %v1135
      %v1137 = vshll.u32 2475754826, %v1131
      %v1138 = vshrl.u32 2131351028, %v1132
      %v1139 = vor.u32 %v1137, %v1138
      %v1140 = vshll.u32 2131351028, %v1131
      %v1141 = vshrl.u32 2102212464, %v1132
      %v1142 = vor.u32 %v1140, %v1141
      %v1143 = vshll.u32 2102212464, %v1131
      %v1144 = vshrl.u32 920167782, %v1132
      %v1145 = vor.u32 %v1143, %v1144
      %v1146 = vshll.u32 920167782, %v1131
      %v1147 = vshrl.u32 1326507024, %v1132
      %v1148 = vor.u32 %v1146, %v1147
      %vm1149 = vcmp.lt.s32.totalorder %v1130, 1
      %vm1150 = vcmp.lt.s32.totalorder %v1130, 2
      %vm1151 = vcmp.lt.s32.totalorder %v1130, 3
      %vm1152 = vcmp.lt.s32.totalorder %v1130, 4
      %v1153 = vsel %vm1149, %v1133, %v1136
      %v1154 = vsel %vm1152, %v1142, 2102212464
      %v1155 = vsel %vm1151, %v1139, %v1154
      %v1156 = vsel %vm1150, %v1153, %v1155
      %v1157 = vsel %vm1149, %v1136, %v1139
      %v1158 = vsel %vm1152, %v1145, 920167782
      %v1159 = vsel %vm1151, %v1142, %v1158
      %v1160 = vsel %vm1150, %v1157, %v1159
      %v1161 = vsel %vm1149, %v1139, %v1142
      %v1162 = vsel %vm1152, %v1148, 1326507024
      %v1163 = vsel %vm1151, %v1145, %v1162
      %v1164 = vsel %vm1150, %v1161, %v1163
      %v1165 = vshll.u32 %v1125, 8
      %v1166 = vmul.u32.u64.compose %v1165, %v1164
      %v1167 = vextract.low.u32 %v1166
      %v1168 = vextract.high.u32 %v1166
      %v1169 = vmul.u32.u64.compose %v1165, %v1160
      %v1170 = vextract.low.u32 %v1169
      %v1171 = vextract.high.u32 %v1169
      %v1172 = vmul.u32 %v1165, %v1156
      %v1173 = vadd.s32 %v1168, %v1170
      %vm1174 = vc.u32 %v1168, %v1170
      %v1175 = vadd.s32 %v1171, 1
      %v1176 = vsel %vm1174, %v1175, %v1171
      %v1177 = vadd.s32 %v1172, %v1176
      %v1178 = vadd.s32 %v1177, 536870912
      %v1179 = vshrl.u32 %v1178, 30
      %v1180 = vshll.u32 %v1179, 30
      %v1181 = vsub.s32 %v1177, %v1180
      %vm1182 = vcmp.lt.s32.totalorder %v1181, 0
      %v1183 = vsub.s32 0, %v1181
      %v1184 = vsel %vm1182, %v1183, %v1181
      %v1185 = vclz %v1184
      %v1186 = vsub.s32 %v1185, 2
      %vm1187 = vcmp.gt.s32.totalorder 0, %v1186
      %v1188 = vsel %vm1187, 0, %v1186
      %v1189 = vsub.s32 32, %v1188
      %v1190 = vshll.u32 %v1181, %v1188
      %v1191 = vshrl.u32 %v1173, %v1189
      %v1192 = vor.u32 %v1190, %v1191
      %v1193 = vsub.s32 4294967266, %v1188
      %v1194 = vadd.s32 %v1193, 127
      %v1195 = vshll.u32 %v1194, 23
      %v1196 = vor.u32 4788187, %v1195
      %v1197 = vand.u32 2147483647, %v1196
      %v1199 = vcvt.s32.f32 %v1192
      %v1200 = vmul.f32 %v1199, %v1197
      %v1201 = vxor.u32 %v1200, 2147483648
      %v1202 = vsel %vm1119, %v1201, %v1200
      %v1203 = vsub.s32 4, %v1179
      %v1204 = vsel %vm1119, %v1203, %v1179
      %v1205 = vsel %vm1118, %v805, %v1202
      %v1206 = vsel %vm1118, 0, %v1204
      %v1207 = vcosq.f32.pop %v1205
      %v1208 = vsinq.f32.pop %v1205
      %vm1209 = vweird.f32 %v805
      %v1210 = vand.u32 %v1206, 3
      %vm1211 = vcmp.lt.s32.totalorder %v1210, 2
      %vm1212 = vcmp.eq.s32.totalorder %v1210, 0
      %v1213 = vxor.u32 %v1208, 2147483648
      %v1214 = vsel %vm1212, %v1207, %v1213
      %vm1215 = vcmp.eq.s32.totalorder %v1210, 2
      %v1216 = vxor.u32 %v1207, 2147483648
      %v1217 = vsel %vm1215, %v1216, %v1208
      %v1218 = vsel %vm1211, %v1214, %v1217
      %v1219 = vsel %vm1209, nan, %v1218
      %v1220 = vrcp.pop %v1116
      %v1221 = vrcp.pop %v1219
      %v1222 = vmul.f32 %v909, %v1220
      %v1223 = vmul.f32 %v1013, %v1221
      %vm1224 = vcmask 326656
      %1225 = vst.msk [vmem:[%s197] sm:$0xff] %vm1224, %v1222
      %1226 = vst.msk [vmem:[%s197 + $0x8] sm:$0xff] %vm1224, %v1223
      %v1227 = vmax.f32 %v756, 0.0
      %v1228 = vmax.f32 %v761, 0.0
      %v1229 = vand.u32 2147483647, %v756
      %v1230 = vand.u32 2147483647, %v761
      %v1231 = vsub.f32 0.0, %v1229
      %v1232 = vsub.f32 0.0, %v1230
      %v1233 = vmul.f32 %v1231, 1.442695
      %v1234 = vpow.pop %v1233
      %v1235 = vmul.f32 %v1232, 1.442695
      %v1236 = vpow.pop %v1235
      %v1237 = vadd.f32 %v1234, 1.0
      %v1238 = vadd.f32 %v1236, 1.0
      %v1239 = vlog2.pop %v1237
      %v1240 = vmul.f32 %v1239, 0.6931472
      %v1241 = vlog2.pop %v1238
      %v1242 = vmul.f32 %v1241, 0.6931472
      %v1243 = vadd.f32 %v1227, %v1240
      %v1244 = vadd.f32 %v1228, %v1242
      %v1245 = vmul.f32 %v1243, 2.88539
      %v1246 = vmul.f32 %v1244, 2.88539
      %v1247 = vadd.f32 %v1245, 0.01
      %v1248 = vadd.f32 %v1246, 0.01
      %1249 = vst.msk [vmem:[%s197 + $0x10] sm:$0xff] %vm1224, %v1247
      %1250 = vst.msk [vmem:[%s197 + $0x18] sm:$0xff] %vm1224, %v1248
      %1251 = vst.msk [vmem:[%s197 + $0x20] sm:$0xff] %vm1224, %v766
      %1252 = vst.msk [vmem:[%s197 + $0x28] sm:$0xff] %vm1224, %v771
      %1253 = vst.msk [vmem:[%s197 + $0x30] sm:$0xff] %vm1224, %v776
      %1254 = vst.msk [vmem:[%s197 + $0x38] sm:$0xff] %vm1224, %v781
      %1255 = vst.msk [vmem:[%s197 + $0x40] sm:$0xff] %vm1224, %v786
      %1256 = vst.msk [vmem:[%s197 + $0x48] sm:$0xff] %vm1224, %v791
      %s1257 = smul.u32 10, %s15
      %p1258 = scmp.lt.s32.totalorder %s1257, 19
      %s1259 = scalar_select %p1258, %s1257, 19
      %s1260 = smul.addr %s1259, 8
      %s1261 = scalar_lea.vmem %s4, %s1260
      // Predicated region
      $region37: #{tpu_custom_call.1} parent=35 // pred_check
        %p1262 = pneg %p122
      $region38: #{tpu_custom_call.1} parent=35 // pred_check_branch
        %1264 = sbr.rel (%p1262) target = $region40
      $region39: #{tpu_custom_call.1} parent=35 // pred_region
        %s1265 = smul.u32 10, %s15
      $region40: #{tpu_custom_call.1} parent=35 // pred_fallthru
        _
    $region36: #{tpu_custom_call.1} parent=5 // pred_fallthru
      _
    %p1266 = scmp.le.s32.totalorder 2, %s10
    // Predicated region
    $region41: #{tpu_custom_call.1} parent=5 // pred_check
      %p1267 = pneg %p1266
    $region42: #{tpu_custom_call.1} parent=5 // pred_check_branch
      %1269 = sbr.rel (%p1267) target = $region44
    $region43: #{tpu_custom_call.1} parent=5 // pred_region
      %s1270 = ssub.s32 %s10, 2
      // Predicated region
      $region45: #{tpu_custom_call.1} parent=43 // pred_check
        %p1271 = pneg %p128
      $region46: #{tpu_custom_call.1} parent=43 // pred_check_branch
        %1273 = sbr.rel (%p1271) target = $region48
      $region47: #{tpu_custom_call.1} parent=43 // pred_region
        %s1274 = smul.u32 10, %s16
        %p1275 = scmp.lt.s32.totalorder %s1274, 19
        %s1276 = scalar_select %p1275, %s1274, 19
        %s1277 = smul.addr %s1276, 8
        %s1278 = scalar_lea.vmem %s4, %s1277
      $region48: #{tpu_custom_call.1} parent=43 // pred_fallthru
        _
    $region44: #{tpu_custom_call.1} parent=5 // pred_fallthru
      _
  $region6: #{tpu_custom_call.1} parent=0 // loop_footer
    %s14 = sadd.s32 1, %s10
  $region7: #{tpu_custom_call.1} parent=0 // loop_footer_branch
    %9 = sbr.rel target = $region3
  $region8: #{tpu_custom_call.1} parent=0 // loop_exit
    _

</llo_original>
